<compile_context>
chip_gen: v5e
topology: v5e:2x2
jax: 0.10.0
libtpu: 0.0.40
codegen_flags: <defaults>
</compile_context>

<pallas_src>
import jax
import jax.numpy as jnp
import numpy as np
from jax.experimental import pallas as pl
from jax.experimental.pallas import tpu as pltpu

EPS = 0.003
H1, H2 = 400, 300          # logical hidden sizes (PyTorch module)
H1P, H2P = 512, 384        # lane/MXU-aligned padded hidden sizes
_SMALL_K = 16              # below this, do the matmul on the VPU, not the MXU


# ---------------------------------------------------------------- kernel ----
def _tiny_k_cols(x, col0, k, w):
    """x[:, col0:col0+k] @ w for tiny static k as VPU broadcast multiply-adds."""
    acc = x[:, col0:col0 + 1] * w[0:1, :]
    for j in range(1, k):
        acc = acc + x[:, col0 + j:col0 + j + 1] * w[j:j + 1, :]
    return acc


def critic_kernel(x_ref, w1_ref, b1_ref, w2s_ref, w2a_ref, b2_ref,
                  w3_ref, b3_ref, o_ref):
    x = x_ref[...]                                   # (TB, S+A) f32, streamed
    sdim = w1_ref.shape[0]
    adim = w2a_ref.shape[0]

    # fc1 (tiny K -> VPU) with FUSED bias + relu + cast to the MXU dtype:
    # only one copy of the largest intermediate (TB x 512) is materialized.
    w1 = w1_ref[...]
    if sdim <= _SMALL_K:
        h1 = _tiny_k_cols(x, 0, sdim, w1)
    else:
        h1 = jnp.dot(x[:, :sdim], w1, preferred_element_type=jnp.float32)
    s1 = jnp.maximum(h1 + b1_ref[...], 0.0).astype(w2s_ref.dtype)   # (TB, H1P)

    # fc2 on concat(s1, action) == s1 @ W2_s + action @ W2_a + b2
    h2 = jnp.dot(s1, w2s_ref[...], preferred_element_type=jnp.float32)  # MXU
    w2a = w2a_ref[...]
    if adim <= _SMALL_K:
        h2a = _tiny_k_cols(x, sdim, adim, w2a)       # VPU path for tiny action_dim
    else:
        h2a = jnp.dot(x[:, sdim:sdim + adim], w2a,
                      preferred_element_type=jnp.float32)

    # Epilogue: adds stay in the f32 accumulators; the ReLU output (s3) and the
    # fc3 multiply run in the epilogue dtype (== w3_ref.dtype: bf16 on v6e/v7x,
    # f32 on v5e which has no bf16 VPU).
    s3 = jnp.maximum(h2 + h2a + b2_ref[...], 0.0).astype(w3_ref.dtype)  # (TB, H2P)

    # fc3 (N = 1): VPU multiply + XLU lane reduction, f32 accumulation.
    prod = (s3 * w3_ref[...]).astype(jnp.float32)
    q = jnp.sum(prod, axis=-1, keepdims=True) + b3_ref[0, 0]
    o_ref[...] = q.astype(o_ref.dtype)


# ---------------------------------------------------------------- wrapper ---
def _round_up(x, m):
    return ((x + m - 1) // m) * m


def _pad_to(x, rows, cols):
    return jnp.pad(x, ((0, rows - x.shape[0]), (0, cols - x.shape[1])))


def _epilogue_dtype():
    """bf16 epilogue on chips with a bf16 VPU (v6e/v7x); f32 elsewhere (v5e)."""
    try:
        kind = jax.devices()[0].device_kind.lower()
    except Exception:
        return jnp.float32
    if any(tag in kind for tag in ("v6", "v7", "7x")):
        return jnp.bfloat16
    return jnp.float32


def prepare_params(params, mxu_dtype=jnp.bfloat16, epilogue_dtype=None):
    """One-time weight prep: zero-pad hidden dims to 512/384, cast the big MXU
    weight to bf16 (f32 accumulation in-kernel), and cast the fc3 row to the
    epilogue dtype (bf16 on v6e/v7x, f32 on v5e)."""
    if epilogue_dtype is None:
        epilogue_dtype = _epilogue_dtype()
    w1, b1, w2s, w2a, b2, w3, b3 = params
    sdim, adim = w1.shape[0], w2a.shape[0]
    w1p = _pad_to(w1, sdim, H1P)                       # (S, 512)  f32 (VPU path)
    b1p = _pad_to(b1, 1, H1P)                          # (1, 512)  f32
    w2sp = _pad_to(w2s, H1P, H2P).astype(mxu_dtype)    # (512,384) bf16 (MXU)
    w2ap = _pad_to(w2a, adim, H2P)                     # (A, 384)  f32 (VPU path)
    b2p = _pad_to(b2, 1, H2P)                          # (1, 384)  f32
    w3p = _pad_to(w3.T, 1, H2P).astype(epilogue_dtype)  # (1, 384) row form
    b3p = b3.reshape(1, 1).astype(jnp.float32)         # scalar -> SMEM
    return (w1p, b1p, w2sp, w2ap, b2p, w3p, b3p)


def _choose_batch_tile(n, block_batch):
    bb = max(8, _round_up(block_batch, 8))      # enforce (8,128) sublane constraint
    tb = min(bb, _round_up(n, 8))
    # Keep >=2 grid steps when the batch allows it so the "parallel" batch axis
    # can shard across both TensorCores on v7x (harmless elsewhere).
    if _round_up(n, tb) // tb < 2 and n > 8:
        tb = max(8, _round_up((n + 1) // 2, 8))
    return tb


def critic_forward(state, action, prepared_params, *, block_batch=1024):
    n, sdim = state.shape
    adim = action.shape[1]
    in_dim = sdim + adim
    w1p, b1p, w2sp, w2ap, b2p, w3p, b3p = prepared_params

    tb = _choose_batch_tile(n, block_batch)
    n_pad = _round_up(n, tb)

    # Single streamed (state|action) input: one DMA + one semaphore per step.
    x = jnp.concatenate([state, action], axis=1)
    if n_pad != n:
        # NOTE: padded tail rows compute relu(b1)-derived nonzero values; they
        # are sliced off below and must not be reused as zeros.
        x = jnp.pad(x, ((0, n_pad - n), (0, 0)))

    resident = lambda i: (0, 0)   # same block every step -> Pallas skips re-DMA
    grid_spec = pltpu.PrefetchScalarGridSpec(
        num_scalar_prefetch=0,
        grid=(n_pad // tb,),
        in_specs=[
            pl.BlockSpec((tb, in_dim), lambda i: (i, 0)),       # state|action (streamed)
            pl.BlockSpec((sdim, H1P), resident),                # W1
            pl.BlockSpec((1, H1P), resident),                   # b1
            pl.BlockSpec((H1P, H2P), resident),                 # W2 state part (bf16)
            pl.BlockSpec((adim, H2P), resident),                # W2 action part
            pl.BlockSpec((1, H2P), resident),                   # b2
            pl.BlockSpec((1, H2P), resident),                   # W3 row (epilogue dtype)
            pl.BlockSpec(memory_space=pltpu.MemorySpace.SMEM),  # b3 scalar
        ],
        out_specs=pl.BlockSpec((tb, 1), lambda i: (i, 0)),
    )

    out = pl.pallas_call(
        critic_kernel,
        out_shape=jax.ShapeDtypeStruct((n_pad, 1), jnp.float32),
        grid_spec=grid_spec,
        compiler_params=pltpu.CompilerParams(
            # batch tiles are independent -> shard across TCs on v7x
            # (switch to pltpu.CORE_PARALLEL if profiling shows one TC idle)
            dimension_semantics=("parallel",),
            vmem_limit_bytes=32 * 1024 * 1024,
        ),
    )(x, w1p, b1p, w2sp, w2ap, b2p, w3p, b3p)
    return out[:n]


# ----------------------------------------------------------- init / ref -----
def init_params(key, state_dim, action_dim):
    """Deterministic init mirroring the PyTorch module's scheme (shapes + ranges)."""
    ks = jax.random.split(key, 6)
    v1 = 1.0 / np.sqrt(H1)
    w1 = jax.random.uniform(ks[0], (state_dim, H1), jnp.float32, -v1, v1)
    b1 = jax.random.uniform(ks[1], (1, H1), jnp.float32, -v1, v1)
    v2 = 1.0 / np.sqrt(H2)
    w2 = jax.random.uniform(ks[2], (H1 + action_dim, H2), jnp.float32, -v2, v2)
    w2s, w2a = w2[:H1], w2[H1:]          # split concat weight: state part / action part
    b2 = jax.random.uniform(ks[3], (1, H2), jnp.float32, -v2, v2)
    w3 = jax.random.uniform(ks[4], (H2, 1), jnp.float32, -EPS, EPS)
    b3 = jax.random.uniform(ks[5], (1, 1), jnp.float32, -EPS, EPS)
    return (w1, b1, w2s, w2a, b2, w3, b3)


def reference_forward(state, action, params):
    w1, b1, w2s, w2a, b2, w3, b3 = params
    s1 = jax.nn.relu(state @ w1 + b1)
    s2 = jnp.concatenate([s1, action], axis=1)
    w2 = jnp.concatenate([w2s, w2a], axis=0)
    s3 = jax.nn.relu(s2 @ w2 + b2)
    return s3 @ w3 + b3


# ---------------------------------------------------------------- main ------
if __name__ == "__main__":
    state_dim, action_dim = 3, 1                     # Pendulum-v1 dims
    key = jax.random.PRNGKey(0)
    k_p, k_s, k_a = jax.random.split(key, 3)
    params = init_params(k_p, state_dim, action_dim)
    prepped = prepare_params(params)                 # pad + cast once, outside kernel

    RTOL, ATOL = 2e-2, 2e-3                          # bf16 MXU + bf16 epilogue

    # 1) tiny batch (single-grid-step, padded-tail path)
    state = jax.random.normal(k_s, (2, state_dim), jnp.float32)
    action = jax.random.uniform(k_a, (2, action_dim), jnp.float32, -2.0, 2.0)
    out = jax.block_until_ready(critic_forward(state, action, prepped))
    ref = reference_forward(state, action, params)
    assert out.shape == (2, 1)
    np.testing.assert_allclose(np.asarray(out), np.asarray(ref), rtol=RTOL, atol=ATOL)

    # 2) non-tile-aligned batch with several grid steps (residency / masking check)
    k_s2, k_a2 = jax.random.split(jax.random.PRNGKey(1), 2)
    state2 = jax.random.normal(k_s2, (37, state_dim), jnp.float32)
    action2 = jax.random.uniform(k_a2, (37, action_dim), jnp.float32, -2.0, 2.0)
    out2 = jax.block_until_ready(
        critic_forward(state2, action2, prepped, block_batch=16))
    ref2 = reference_forward(state2, action2, params)
    assert out2.shape == (37, 1)
    np.testing.assert_allclose(np.asarray(out2), np.asarray(ref2), rtol=RTOL, atol=ATOL)

    # 3) mid-size batch at the default tile -> auto-split into >=2 grid steps
    k_s3, k_a3 = jax.random.split(jax.random.PRNGKey(2), 2)
    state3 = jax.random.normal(k_s3, (300, state_dim), jnp.float32)
    action3 = jax.random.uniform(k_a3, (300, action_dim), jnp.float32, -2.0, 2.0)
    out3 = jax.block_until_ready(critic_forward(state3, action3, prepped))
    ref3 = reference_forward(state3, action3, params)
    assert out3.shape == (300, 1)
    np.testing.assert_allclose(np.asarray(out3), np.asarray(ref3), rtol=RTOL, atol=ATOL)

    print("KERNEL_OK")
</pallas_src>

<mosaic_0001>
module attributes {stable_mosaic.version = 11 : i64} {
  func.func @critic_kernel(%arg0: i32, %arg1: memref<8x4xf32, #tpu.memory_space<vmem>>, %arg2: memref<3x512xf32, #tpu.memory_space<vmem>>, %arg3: memref<1x512xf32, #tpu.memory_space<vmem>>, %arg4: memref<512x384xbf16, #tpu.memory_space<vmem>>, %arg5: memref<1x384xf32, #tpu.memory_space<vmem>>, %arg6: memref<1x384xf32, #tpu.memory_space<vmem>>, %arg7: memref<1x384xf32, #tpu.memory_space<vmem>>, %arg8: memref<1x1xf32, #tpu.memory_space<smem>>, %arg9: memref<8x1xf32, #tpu.memory_space<vmem>>) attributes {dimension_semantics = [#tpu.dimension_semantics<parallel>], iteration_bounds = array<i64: 1>, scalar_prefetch = 0 : i64, scratch_operands = 0 : i64, tpu.core_type = #tpu.core_type<tc>, window_params = [{transform_indices = @transform_0, window_bounds = array<i64: 8, 4>}, {pipeline_mode = #tpu.pipeline_mode<synchronous>, transform_indices = @transform_1, window_bounds = array<i64: 3, 512>}, {pipeline_mode = #tpu.pipeline_mode<synchronous>, transform_indices = @transform_2, window_bounds = array<i64: 1, 512>}, {pipeline_mode = #tpu.pipeline_mode<synchronous>, transform_indices = @transform_3, window_bounds = array<i64: 512, 384>}, {pipeline_mode = #tpu.pipeline_mode<synchronous>, transform_indices = @transform_4, window_bounds = array<i64: 1, 384>}, {pipeline_mode = #tpu.pipeline_mode<synchronous>, transform_indices = @transform_5, window_bounds = array<i64: 1, 384>}, {pipeline_mode = #tpu.pipeline_mode<synchronous>, transform_indices = @transform_6, window_bounds = array<i64: 1, 384>}, {transform_indices = @transform_7, window_bounds = array<i64: 1, 1>}, {transform_indices = @transform_8, window_bounds = array<i64: 8, 1>}]} {
    %c0 = arith.constant 0 : index
    %c0_0 = arith.constant 0 : index
    %0 = vector.load %arg1[%c0, %c0_0] : memref<8x4xf32, #tpu.memory_space<vmem>>, vector<8x4xf32>
    %c0_1 = arith.constant 0 : index
    %c0_2 = arith.constant 0 : index
    %1 = vector.load %arg2[%c0_1, %c0_2] : memref<3x512xf32, #tpu.memory_space<vmem>>, vector<3x512xf32>
    %2 = vector.extract_strided_slice %0 {offsets = [0, 0], sizes = [8, 1], strides = [1, 1]} : vector<8x4xf32> to vector<8x1xf32>
    %3 = vector.extract_strided_slice %1 {offsets = [0, 0], sizes = [1, 512], strides = [1, 1]} : vector<3x512xf32> to vector<1x512xf32>
    %4 = vector.broadcast %2 : vector<8x1xf32> to vector<8x512xf32>
    %5 = vector.broadcast %3 : vector<1x512xf32> to vector<8x512xf32>
    %6 = arith.mulf %4, %5 : vector<8x512xf32>
    %7 = vector.extract_strided_slice %0 {offsets = [0, 1], sizes = [8, 1], strides = [1, 1]} : vector<8x4xf32> to vector<8x1xf32>
    %8 = vector.extract_strided_slice %1 {offsets = [1, 0], sizes = [1, 512], strides = [1, 1]} : vector<3x512xf32> to vector<1x512xf32>
    %9 = vector.broadcast %7 : vector<8x1xf32> to vector<8x512xf32>
    %10 = vector.broadcast %8 : vector<1x512xf32> to vector<8x512xf32>
    %11 = arith.mulf %9, %10 : vector<8x512xf32>
    %12 = arith.addf %6, %11 : vector<8x512xf32>
    %13 = vector.extract_strided_slice %0 {offsets = [0, 2], sizes = [8, 1], strides = [1, 1]} : vector<8x4xf32> to vector<8x1xf32>
    %14 = vector.extract_strided_slice %1 {offsets = [2, 0], sizes = [1, 512], strides = [1, 1]} : vector<3x512xf32> to vector<1x512xf32>
    %15 = vector.broadcast %13 : vector<8x1xf32> to vector<8x512xf32>
    %16 = vector.broadcast %14 : vector<1x512xf32> to vector<8x512xf32>
    %17 = arith.mulf %15, %16 : vector<8x512xf32>
    %18 = arith.addf %12, %17 : vector<8x512xf32>
    %c0_3 = arith.constant 0 : index
    %c0_4 = arith.constant 0 : index
    %19 = vector.load %arg3[%c0_3, %c0_4] : memref<1x512xf32, #tpu.memory_space<vmem>>, vector<1x512xf32>
    %20 = vector.broadcast %19 : vector<1x512xf32> to vector<8x512xf32>
    %21 = arith.addf %18, %20 : vector<8x512xf32>
    %cst = arith.constant 0.000000e+00 : f32
    %22 = vector.broadcast %cst : f32 to vector<8x512xf32>
    %23 = arith.maximumf %21, %22 : vector<8x512xf32>
    %24 = arith.truncf %23 : vector<8x512xf32> to vector<8x512xbf16>
    %c0_5 = arith.constant 0 : index
    %c0_6 = arith.constant 0 : index
    %25 = vector.load %arg4[%c0_5, %c0_6] : memref<512x384xbf16, #tpu.memory_space<vmem>>, vector<512x384xbf16>
    %cst_7 = arith.constant dense<0.000000e+00> : vector<8x384xf32>
    %26 = tpu.matmul %24, %25, %cst_7 {dimension_numbers = #tpu.dot_dimension_numbers<[1], [0], [0], [1], [0, 0, 1, 1], [], []>} : vector<8x512xbf16>, vector<512x384xbf16>, vector<8x384xf32> -> vector<8x384xf32>
    %c0_8 = arith.constant 0 : index
    %c0_9 = arith.constant 0 : index
    %27 = vector.load %arg5[%c0_8, %c0_9] : memref<1x384xf32, #tpu.memory_space<vmem>>, vector<1x384xf32>
    %28 = vector.extract_strided_slice %0 {offsets = [0, 3], sizes = [8, 1], strides = [1, 1]} : vector<8x4xf32> to vector<8x1xf32>
    %29 = vector.broadcast %28 : vector<8x1xf32> to vector<8x384xf32>
    %30 = vector.broadcast %27 : vector<1x384xf32> to vector<8x384xf32>
    %31 = arith.mulf %29, %30 : vector<8x384xf32>
    %32 = arith.addf %26, %31 : vector<8x384xf32>
    %c0_10 = arith.constant 0 : index
    %c0_11 = arith.constant 0 : index
    %33 = vector.load %arg6[%c0_10, %c0_11] : memref<1x384xf32, #tpu.memory_space<vmem>>, vector<1x384xf32>
    %34 = vector.broadcast %33 : vector<1x384xf32> to vector<8x384xf32>
    %35 = arith.addf %32, %34 : vector<8x384xf32>
    %cst_12 = arith.constant 0.000000e+00 : f32
    %36 = vector.broadcast %cst_12 : f32 to vector<8x384xf32>
    %37 = arith.maximumf %35, %36 : vector<8x384xf32>
    %c0_13 = arith.constant 0 : index
    %c0_14 = arith.constant 0 : index
    %38 = vector.load %arg7[%c0_13, %c0_14] : memref<1x384xf32, #tpu.memory_space<vmem>>, vector<1x384xf32>
    %39 = vector.broadcast %38 : vector<1x384xf32> to vector<8x384xf32>
    %40 = arith.mulf %37, %39 : vector<8x384xf32>
    %cst_15 = arith.constant dense<0.000000e+00> : vector<8xf32>
    %41 = vector.multi_reduction <add>, %40, %cst_15 [1] : vector<8x384xf32> to vector<8xf32>
    %42 = vector.shape_cast %41 : vector<8xf32> to vector<8x1xf32>
    %c0_16 = arith.constant 0 : index
    %c0_17 = arith.constant 0 : index
    %43 = memref.load %arg8[%c0_16, %c0_17] : memref<1x1xf32, #tpu.memory_space<smem>>
    %44 = vector.broadcast %43 : f32 to vector<8x1xf32>
    %45 = arith.addf %42, %44 : vector<8x1xf32>
    %c0_18 = arith.constant 0 : index
    %c0_19 = arith.constant 0 : index
    %46 = vector.load %arg9[%c0_18, %c0_19] : memref<8x1xf32, #tpu.memory_space<vmem>>, vector<8x1xf32>
    tpu.vector_store %arg9[%c0_18, %c0_19], %45 {strides = array<i32>} : memref<8x1xf32, #tpu.memory_space<vmem>>, vector<8x1xf32>,
    return
  }
  func.func @transform_0(%arg0: i32) -> (i32, i32) {
    %c0_i32 = arith.constant 0 : i32
    %c0_i32_0 = arith.constant 0 : i32
    return %arg0, %c0_i32 : i32, i32
  }
  func.func @transform_1(%arg0: i32) -> (i32, i32) {
    %c0_i32 = arith.constant 0 : i32
    %c0_i32_0 = arith.constant 0 : i32
    %c0_i32_1 = arith.constant 0 : i32
    return %c0_i32, %c0_i32_0 : i32, i32
  }
  func.func @transform_2(%arg0: i32) -> (i32, i32) {
    %c0_i32 = arith.constant 0 : i32
    %c0_i32_0 = arith.constant 0 : i32
    %c0_i32_1 = arith.constant 0 : i32
    return %c0_i32, %c0_i32_0 : i32, i32
  }
  func.func @transform_3(%arg0: i32) -> (i32, i32) {
    %c0_i32 = arith.constant 0 : i32
    %c0_i32_0 = arith.constant 0 : i32
    %c0_i32_1 = arith.constant 0 : i32
    return %c0_i32, %c0_i32_0 : i32, i32
  }
  func.func @transform_4(%arg0: i32) -> (i32, i32) {
    %c0_i32 = arith.constant 0 : i32
    %c0_i32_0 = arith.constant 0 : i32
    %c0_i32_1 = arith.constant 0 : i32
    return %c0_i32, %c0_i32_0 : i32, i32
  }
  func.func @transform_5(%arg0: i32) -> (i32, i32) {
    %c0_i32 = arith.constant 0 : i32
    %c0_i32_0 = arith.constant 0 : i32
    %c0_i32_1 = arith.constant 0 : i32
    return %c0_i32, %c0_i32_0 : i32, i32
  }
  func.func @transform_6(%arg0: i32) -> (i32, i32) {
    %c0_i32 = arith.constant 0 : i32
    %c0_i32_0 = arith.constant 0 : i32
    %c0_i32_1 = arith.constant 0 : i32
    return %c0_i32, %c0_i32_0 : i32, i32
  }
  func.func @transform_7(%arg0: i32) -> (i32, i32) {
    %c0_i32 = arith.constant 0 : i32
    %c0_i32_0 = arith.constant 0 : i32
    %c0_i32_1 = arith.constant 0 : i32
    return %c0_i32, %c0_i32_0 : i32, i32
  }
  func.func @transform_8(%arg0: i32) -> (i32, i32) {
    %c0_i32 = arith.constant 0 : i32
    %c0_i32_0 = arith.constant 0 : i32
    return %arg0, %c0_i32 : i32, i32
  }
}

</mosaic_0001>

<llo_original>
// kernel: tpu_custom_call.1
$region0: #{tpu_custom_call.1}
  #allocation0 [shape = 'u32[]', space=smem, size = 0x4, offset = 0x4, fixed_abs, tag = 'smem constant byte address 0x4 - core index']
  #allocation1 [shape = 'u32[72,128]{1,0:T(1,128)}', space=vmem, size = 0x9000, scoped, tag = 'internal scratch']
  #allocation2 [shape = 'f32[1,1]{1,0:T(1,128)S(6)}', space=smem, size = 0x200, scoped, tag = 'scoped memory for tpu_custom_call.1']
  %s0 = inlined_call_operand.vmem [shape: f32[8,4], index: 0, kind: input, shape index: {}]
  %s1 = inlined_call_operand.hbm [shape: f32[3,512], index: 1, kind: input, shape index: {}]
  %s2 = inlined_call_operand.vmem [shape: f32[1,512], index: 2, kind: input, shape index: {}]
  %s3 = inlined_call_operand.hbm [shape: bf16[512,384], index: 3, kind: input, shape index: {}]
  %s4 = inlined_call_operand.vmem [shape: f32[1,384], index: 4, kind: input, shape index: {}]
  %s5 = inlined_call_operand.vmem [shape: f32[1,384], index: 5, kind: input, shape index: {}]
  %s6 = inlined_call_operand.vmem [shape: f32[1,384], index: 6, kind: input, shape index: {}]
  %s7 = inlined_call_operand.<no memory space> [shape: f32[1,1], index: 7, kind: input, shape index: {}]
  %s8 = inlined_call_operand.vmem [shape: f32[8,1], index: 8, kind: output, shape index: {}]
  %s9 = sld [smem:[#allocation0]]
  $region50: #{tpu_custom_call.1} parent=0
    _
  %s11 = ssub.s32 1, %s9
  %s12 = scalar_select 0, %s11, %s9
  %13 = sst [smem:[#allocation2]] %s7
  $region1: #{tpu_custom_call.1} parent=0
    #allocation3 [shape = 'u8[8192]{0}', space=vmem, size = 0x2000, scoped, tag = 'input window, operand 1, single buffered']
    #allocation4 [shape = 's32[1]{0}', space=sflag, size = 0x4, scoped, tag = 'scoped memory for tpu_custom_call.1']
    #allocation5 [shape = 'u8[393216]{0}', space=vmem, size = 0x60000, scoped, tag = 'input window, operand 3, single buffered']
    #allocation6 [shape = 's32[1]{0}', space=sflag, size = 0x4, scoped, tag = 'scoped memory for tpu_custom_call.1']
    %14 = vsyncpa [#allocation4], 0
    %15 = vsyncpa [#allocation6], 0
    // Predicated region
    $region2: #{tpu_custom_call.1} parent=1 // pred_check
      _
    $region3: #{tpu_custom_call.1} parent=1 // pred_check_branch
      %17 = sbr.rel (0) target = $region5
    $region4: #{tpu_custom_call.1} parent=1 // pred_region
      _
    $region5: #{tpu_custom_call.1} parent=1 // pred_fallthru
      _
    // Predicated region
    $region6: #{tpu_custom_call.1} parent=1 // pred_check
      _
    $region7: #{tpu_custom_call.1} parent=1 // pred_check_branch
      %19 = sbr.rel (0) target = $region9
    $region8: #{tpu_custom_call.1} parent=1 // pred_region
      %21 = vsyncadd [#allocation4], 0
      %s23 = sshll.u32 %s1, 4
      %s24 = int_to_ptr.hbm [resolvable:$true] %s23
      %s25 = sshll.u32 [#allocation3], 4
      %s26 = int_to_ptr.vmem [resolvable:$true] %s25
      %28 = dma.hbm_to_vmem [thread:$0]  %s24, 256, %s26, [#allocation4]
    $region9: #{tpu_custom_call.1} parent=1 // pred_fallthru
      _
    // Predicated region
    $region10: #{tpu_custom_call.1} parent=1 // pred_check
      _
    $region11: #{tpu_custom_call.1} parent=1 // pred_check_branch
      %30 = sbr.rel (0) target = $region13
    $region12: #{tpu_custom_call.1} parent=1 // pred_region
      _
    $region13: #{tpu_custom_call.1} parent=1 // pred_fallthru
      _
    // Predicated region
    $region14: #{tpu_custom_call.1} parent=1 // pred_check
      _
    $region15: #{tpu_custom_call.1} parent=1 // pred_check_branch
      %32 = sbr.rel (0) target = $region17
    $region16: #{tpu_custom_call.1} parent=1 // pred_region
      %34 = vsyncadd [#allocation6], 0
      %s35 = sshll.u32 %s3, 4
      %s36 = int_to_ptr.hbm [resolvable:$true] %s35
      %s37 = sshll.u32 [#allocation5], 4
      %s38 = int_to_ptr.vmem [resolvable:$true] %s37
      %43 = dma.hbm_to_vmem [thread:$0]  %s36, 12288, %s38, [#allocation6], 192, 192, 12
    $region17: #{tpu_custom_call.1} parent=1 // pred_fallthru
      _
    // Predicated region
    $region18: #{tpu_custom_call.1} parent=1 // pred_check
      _
    $region19: #{tpu_custom_call.1} parent=1 // pred_check_branch
      %45 = sbr.rel (0) target = $region21
    $region20: #{tpu_custom_call.1} parent=1 // pred_region
      _
    $region21: #{tpu_custom_call.1} parent=1 // pred_fallthru
      _
    // Predicated region
    $region22: #{tpu_custom_call.1} parent=1 // pred_check
      _
    $region23: #{tpu_custom_call.1} parent=1 // pred_check_branch
      %47 = sbr.rel (0) target = $region25
    $region24: #{tpu_custom_call.1} parent=1 // pred_region
      _
    $region25: #{tpu_custom_call.1} parent=1 // pred_fallthru
      _
    // Predicated region
    $region26: #{tpu_custom_call.1} parent=1 // pred_check
      _
    $region27: #{tpu_custom_call.1} parent=1 // pred_check_branch
      %49 = sbr.rel (0) target = $region29
    $region28: #{tpu_custom_call.1} parent=1 // pred_region
      _
    $region29: #{tpu_custom_call.1} parent=1 // pred_fallthru
      _
    // Predicated region
    $region30: #{tpu_custom_call.1} parent=1 // pred_check
      _
    $region31: #{tpu_custom_call.1} parent=1 // pred_check_branch
      %51 = sbr.rel (0) target = $region33
    $region32: #{tpu_custom_call.1} parent=1 // pred_region
      _
    $region33: #{tpu_custom_call.1} parent=1 // pred_fallthru
      _
    // Predicated region
    $region34: #{tpu_custom_call.1} parent=1 // pred_check
      _
    $region35: #{tpu_custom_call.1} parent=1 // pred_check_branch
      %53 = sbr.rel (0) target = $region37
    $region36: #{tpu_custom_call.1} parent=1 // pred_region
      %55 = dma.done [#allocation4], 256
    $region37: #{tpu_custom_call.1} parent=1 // pred_fallthru
      _
    // Predicated region
    $region38: #{tpu_custom_call.1} parent=1 // pred_check
      _
    $region39: #{tpu_custom_call.1} parent=1 // pred_check_branch
      %57 = sbr.rel (0) target = $region41
    $region40: #{tpu_custom_call.1} parent=1 // pred_region
      %59 = dma.done [#allocation6], 12288
    $region41: #{tpu_custom_call.1} parent=1 // pred_fallthru
      _
    %v60 = vld [vmem:[%s0] sm:$0xff]
    %v61 = vld [vmem:[#allocation3] sm:$0x77]
    %v62 = vld [vmem:[#allocation3 + $0x8] sm:$0x77]
    %64 = vset.pattern.permute.xlu0 0
    %65 = vperm.xlu0 %64, %v60
    %v66 = vpop.permute.xlu0 %65
    %v70 = vperm.slane %v61, 0
    %v71 = vperm.slane %v61, 4
    %v72 = vperm.slane %v62, 0
    %v73 = vperm.slane %v62, 4
    %v78 = vperm.slane %v70, 0
    %v79 = vperm.slane %v71, 0
    %v80 = vperm.slane %v72, 0
    %v81 = vperm.slane %v73, 0
    %v82 = vmul.f32 %v66, %v78
    %v83 = vmul.f32 %v66, %v79
    %v84 = vmul.f32 %v66, %v80
    %v85 = vmul.f32 %v66, %v81
    %86 = vset.pattern.permute.xlu0 1
    %87 = vperm.xlu0 %86, %v60
    %v88 = vpop.permute.xlu0 %87
    %v90 = vperm.slane %v61, 1
    %v91 = vperm.slane %v61, 5
    %v92 = vperm.slane %v62, 1
    %v93 = vperm.slane %v62, 5
    %v98 = vperm.slane %v90, 1
    %v99 = vperm.slane %v91, 1
    %v100 = vperm.slane %v92, 1
    %v101 = vperm.slane %v93, 1
    %v102 = vmul.f32 %v88, %v98
    %v103 = vmul.f32 %v88, %v99
    %v104 = vmul.f32 %v88, %v100
    %v105 = vmul.f32 %v88, %v101
    %v106 = vadd.f32 %v82, %v102
    %v107 = vadd.f32 %v83, %v103
    %v108 = vadd.f32 %v84, %v104
    %v109 = vadd.f32 %v85, %v105
    %110 = vset.pattern.permute.xlu0 2
    %111 = vperm.xlu0 %110, %v60
    %v112 = vpop.permute.xlu0 %111
    %v114 = vperm.slane %v61, 2
    %v115 = vperm.slane %v61, 6
    %v116 = vperm.slane %v62, 2
    %v117 = vperm.slane %v62, 6
    %v122 = vperm.slane %v114, 2
    %v123 = vperm.slane %v115, 2
    %v124 = vperm.slane %v116, 2
    %v125 = vperm.slane %v117, 2
    %v126 = vmul.f32 %v112, %v122
    %v127 = vmul.f32 %v112, %v123
    %v128 = vmul.f32 %v112, %v124
    %v129 = vmul.f32 %v112, %v125
    %v130 = vadd.f32 %v106, %v126
    %v131 = vadd.f32 %v107, %v127
    %v132 = vadd.f32 %v108, %v128
    %v133 = vadd.f32 %v109, %v129
    %v134 = vld [vmem:[%s2] sm:$0xf]
    %v136 = vperm.slane %v134, 0
    %v137 = vperm.slane %v134, 1
    %v138 = vperm.slane %v134, 2
    %v139 = vperm.slane %v134, 3
    %v144 = vadd.f32 %v130, %v136
    %v145 = vadd.f32 %v131, %v137
    %v146 = vadd.f32 %v132, %v138
    %v147 = vadd.f32 %v133, %v139
    %v148 = vmax.f32 %v144, 0.0
    %v149 = vmax.f32 %v145, 0.0
    %v150 = vmax.f32 %v146, 0.0
    %v151 = vmax.f32 %v147, 0.0
    %v152 = vpack.c.bf16 %v148, %v148
    %v153 = vpack.c.bf16 %v149, %v149
    %v154 = vpack.c.bf16 %v150, %v150
    %v155 = vpack.c.bf16 %v151, %v151
    %v156 = vld [vmem:[#allocation5] sm:$0xff]
    %v157 = vld [vmem:[#allocation5 + $0x8] sm:$0xf]
    %v158 = vld [vmem:[#allocation5 + $0xc] sm:$0xff]
    %v159 = vld [vmem:[#allocation5 + $0x14] sm:$0xf]
    %v160 = vld [vmem:[#allocation5 + $0x18] sm:$0xff]
    %v161 = vld [vmem:[#allocation5 + $0x20] sm:$0xf]
    %v162 = vld [vmem:[#allocation5 + $0x24] sm:$0xff]
    %v163 = vld [vmem:[#allocation5 + $0x2c] sm:$0xf]
    %v164 = vld [vmem:[#allocation5 + $0x30] sm:$0xff]
    %v165 = vld [vmem:[#allocation5 + $0x38] sm:$0xf]
    %v166 = vld [vmem:[#allocation5 + $0x3c] sm:$0xff]
    %v167 = vld [vmem:[#allocation5 + $0x44] sm:$0xf]
    %v168 = vld [vmem:[#allocation5 + $0x48] sm:$0xff]
    %v169 = vld [vmem:[#allocation5 + $0x50] sm:$0xf]
    %v170 = vld [vmem:[#allocation5 + $0x54] sm:$0xff]
    %v171 = vld [vmem:[#allocation5 + $0x5c] sm:$0xf]
    %v172 = vld [vmem:[#allocation5 + $0x60] sm:$0xff]
    %v173 = vld [vmem:[#allocation5 + $0x68] sm:$0xf]
    %v174 = vld [vmem:[#allocation5 + $0x6c] sm:$0xff]
    %v175 = vld [vmem:[#allocation5 + $0x74] sm:$0xf]
    %v176 = vld [vmem:[#allocation5 + $0x78] sm:$0xff]
    %v177 = vld [vmem:[#allocation5 + $0x80] sm:$0xf]
    %v178 = vld [vmem:[#allocation5 + $0x84] sm:$0xff]
    %v179 = vld [vmem:[#allocation5 + $0x8c] sm:$0xf]
    %v180 = vld [vmem:[#allocation5 + $0x90] sm:$0xff]
    %v181 = vld [vmem:[#allocation5 + $0x98] sm:$0xf]
    %v182 = vld [vmem:[#allocation5 + $0x9c] sm:$0xff]
    %v183 = vld [vmem:[#allocation5 + $0xa4] sm:$0xf]
    %v184 = vld [vmem:[#allocation5 + $0xa8] sm:$0xff]
    %v185 = vld [vmem:[#allocation5 + $0xb0] sm:$0xf]
    %v186 = vld [vmem:[#allocation5 + $0xb4] sm:$0xff]
    %v187 = vld [vmem:[#allocation5 + $0xbc] sm:$0xf]
    %v188 = vld [vmem:[#allocation5 + $0xc0] sm:$0xff]
    %v189 = vld [vmem:[#allocation5 + $0xc8] sm:$0xf]
    %v190 = vld [vmem:[#allocation5 + $0xcc] sm:$0xff]
    %v191 = vld [vmem:[#allocation5 + $0xd4] sm:$0xf]
    %v192 = vld [vmem:[#allocation5 + $0xd8] sm:$0xff]
    %v193 = vld [vmem:[#allocation5 + $0xe0] sm:$0xf]
    %v194 = vld [vmem:[#allocation5 + $0xe4] sm:$0xff]
    %v195 = vld [vmem:[#allocation5 + $0xec] sm:$0xf]
    %v196 = vld [vmem:[#allocation5 + $0xf0] sm:$0xff]
    %v197 = vld [vmem:[#allocation5 + $0xf8] sm:$0xf]
    %v198 = vld [vmem:[#allocation5 + $0xfc] sm:$0xff]
    %v199 = vld [vmem:[#allocation5 + $0x104] sm:$0xf]
    %v200 = vld [vmem:[#allocation5 + $0x108] sm:$0xff]
    %v201 = vld [vmem:[#allocation5 + $0x110] sm:$0xf]
    %v202 = vld [vmem:[#allocation5 + $0x114] sm:$0xff]
    %v203 = vld [vmem:[#allocation5 + $0x11c] sm:$0xf]
    %v204 = vld [vmem:[#allocation5 + $0x120] sm:$0xff]
    %v205 = vld [vmem:[#allocation5 + $0x128] sm:$0xf]
    %v206 = vld [vmem:[#allocation5 + $0x12c] sm:$0xff]
    %v207 = vld [vmem:[#allocation5 + $0x134] sm:$0xf]
    %v208 = vld [vmem:[#allocation5 + $0x138] sm:$0xff]
    %v209 = vld [vmem:[#allocation5 + $0x140] sm:$0xf]
    %v210 = vld [vmem:[#allocation5 + $0x144] sm:$0xff]
    %v211 = vld [vmem:[#allocation5 + $0x14c] sm:$0xf]
    %v212 = vld [vmem:[#allocation5 + $0x150] sm:$0xff]
    %v213 = vld [vmem:[#allocation5 + $0x158] sm:$0xf]
    %v214 = vld [vmem:[#allocation5 + $0x15c] sm:$0xff]
    %v215 = vld [vmem:[#allocation5 + $0x164] sm:$0xf]
    %v216 = vld [vmem:[#allocation5 + $0x168] sm:$0xff]
    %v217 = vld [vmem:[#allocation5 + $0x170] sm:$0xf]
    %v218 = vld [vmem:[#allocation5 + $0x174] sm:$0xff]
    %v219 = vld [vmem:[#allocation5 + $0x17c] sm:$0xf]
    %v220 = vld [vmem:[#allocation5 + $0x180] sm:$0xff]
    %v221 = vld [vmem:[#allocation5 + $0x188] sm:$0xf]
    %v222 = vld [vmem:[#allocation5 + $0x18c] sm:$0xff]
    %v223 = vld [vmem:[#allocation5 + $0x194] sm:$0xf]
    %v224 = vld [vmem:[#allocation5 + $0x198] sm:$0xff]
    %v225 = vld [vmem:[#allocation5 + $0x1a0] sm:$0xf]
    %v226 = vld [vmem:[#allocation5 + $0x1a4] sm:$0xff]
    %v227 = vld [vmem:[#allocation5 + $0x1ac] sm:$0xf]
    %v228 = vld [vmem:[#allocation5 + $0x1b0] sm:$0xff]
    %v229 = vld [vmem:[#allocation5 + $0x1b8] sm:$0xf]
    %v230 = vld [vmem:[#allocation5 + $0x1bc] sm:$0xff]
    %v231 = vld [vmem:[#allocation5 + $0x1c4] sm:$0xf]
    %v232 = vld [vmem:[#allocation5 + $0x1c8] sm:$0xff]
    %v233 = vld [vmem:[#allocation5 + $0x1d0] sm:$0xf]
    %v234 = vld [vmem:[#allocation5 + $0x1d4] sm:$0xff]
    %v235 = vld [vmem:[#allocation5 + $0x1dc] sm:$0xf]
    %v236 = vld [vmem:[#allocation5 + $0x1e0] sm:$0xff]
    %v237 = vld [vmem:[#allocation5 + $0x1e8] sm:$0xf]
    %v238 = vld [vmem:[#allocation5 + $0x1ec] sm:$0xff]
    %v239 = vld [vmem:[#allocation5 + $0x1f4] sm:$0xf]
    %v240 = vld [vmem:[#allocation5 + $0x1f8] sm:$0xff]
    %v241 = vld [vmem:[#allocation5 + $0x200] sm:$0xf]
    %v242 = vld [vmem:[#allocation5 + $0x204] sm:$0xff]
    %v243 = vld [vmem:[#allocation5 + $0x20c] sm:$0xf]
    %v244 = vld [vmem:[#allocation5 + $0x210] sm:$0xff]
    %v245 = vld [vmem:[#allocation5 + $0x218] sm:$0xf]
    %v246 = vld [vmem:[#allocation5 + $0x21c] sm:$0xff]
    %v247 = vld [vmem:[#allocation5 + $0x224] sm:$0xf]
    %v248 = vld [vmem:[#allocation5 + $0x228] sm:$0xff]
    %v249 = vld [vmem:[#allocation5 + $0x230] sm:$0xf]
    %v250 = vld [vmem:[#allocation5 + $0x234] sm:$0xff]
    %v251 = vld [vmem:[#allocation5 + $0x23c] sm:$0xf]
    %v252 = vld [vmem:[#allocation5 + $0x240] sm:$0xff]
    %v253 = vld [vmem:[#allocation5 + $0x248] sm:$0xf]
    %v254 = vld [vmem:[#allocation5 + $0x24c] sm:$0xff]
    %v255 = vld [vmem:[#allocation5 + $0x254] sm:$0xf]
    %v256 = vld [vmem:[#allocation5 + $0x258] sm:$0xff]
    %v257 = vld [vmem:[#allocation5 + $0x260] sm:$0xf]
    %v258 = vld [vmem:[#allocation5 + $0x264] sm:$0xff]
    %v259 = vld [vmem:[#allocation5 + $0x26c] sm:$0xf]
    %v260 = vld [vmem:[#allocation5 + $0x270] sm:$0xff]
    %v261 = vld [vmem:[#allocation5 + $0x278] sm:$0xf]
    %v262 = vld [vmem:[#allocation5 + $0x27c] sm:$0xff]
    %v263 = vld [vmem:[#allocation5 + $0x284] sm:$0xf]
    %v264 = vld [vmem:[#allocation5 + $0x288] sm:$0xff]
    %v265 = vld [vmem:[#allocation5 + $0x290] sm:$0xf]
    %v266 = vld [vmem:[#allocation5 + $0x294] sm:$0xff]
    %v267 = vld [vmem:[#allocation5 + $0x29c] sm:$0xf]
    %v268 = vld [vmem:[#allocation5 + $0x2a0] sm:$0xff]
    %v269 = vld [vmem:[#allocation5 + $0x2a8] sm:$0xf]
    %v270 = vld [vmem:[#allocation5 + $0x2ac] sm:$0xff]
    %v271 = vld [vmem:[#allocation5 + $0x2b4] sm:$0xf]
    %v272 = vld [vmem:[#allocation5 + $0x2b8] sm:$0xff]
    %v273 = vld [vmem:[#allocation5 + $0x2c0] sm:$0xf]
    %v274 = vld [vmem:[#allocation5 + $0x2c4] sm:$0xff]
    %v275 = vld [vmem:[#allocation5 + $0x2cc] sm:$0xf]
    %v276 = vld [vmem:[#allocation5 + $0x2d0] sm:$0xff]
    %v277 = vld [vmem:[#allocation5 + $0x2d8] sm:$0xf]
    %v278 = vld [vmem:[#allocation5 + $0x2dc] sm:$0xff]
    %v279 = vld [vmem:[#allocation5 + $0x2e4] sm:$0xf]
    %v280 = vld [vmem:[#allocation5 + $0x2e8] sm:$0xff]
    %v281 = vld [vmem:[#allocation5 + $0x2f0] sm:$0xf]
    %v282 = vld [vmem:[#allocation5 + $0x2f4] sm:$0xff]
    %v283 = vld [vmem:[#allocation5 + $0x2fc] sm:$0xf]
    %v284 = vld [vmem:[%s4] sm:$0x7]
    %285 = vset.pattern.permute.xlu0 3
    %286 = vperm.xlu0 %285, %v60
    %v287 = vpop.permute.xlu0 %286
    %v290 = vperm.slane %v284, 0
    %v291 = vperm.slane %v284, 1
    %v292 = vperm.slane %v284, 2
    %v296 = vmul.f32 %v287, %v290
    %v297 = vmul.f32 %v287, %v291
    %v298 = vmul.f32 %v287, %v292
    %v427 = vunpack.c.l.b16 %v156
    %v428 = vunpack.c.h.b16 %v156
    %v429 = vunpack.c.l.b16 %v157
    %v430 = vunpack.c.l.b16 %v158
    %v431 = vunpack.c.h.b16 %v158
    %v432 = vunpack.c.l.b16 %v159
    %v433 = vunpack.c.l.b16 %v160
    %v434 = vunpack.c.h.b16 %v160
    %v435 = vunpack.c.l.b16 %v161
    %v436 = vunpack.c.l.b16 %v162
    %v437 = vunpack.c.h.b16 %v162
    %v438 = vunpack.c.l.b16 %v163
    %v439 = vunpack.c.l.b16 %v164
    %v440 = vunpack.c.h.b16 %v164
    %v441 = vunpack.c.l.b16 %v165
    %v442 = vunpack.c.l.b16 %v166
    %v443 = vunpack.c.h.b16 %v166
    %v444 = vunpack.c.l.b16 %v167
    %v445 = vunpack.c.l.b16 %v168
    %v446 = vunpack.c.h.b16 %v168
    %v447 = vunpack.c.l.b16 %v169
    %v448 = vunpack.c.l.b16 %v170
    %v449 = vunpack.c.h.b16 %v170
    %v450 = vunpack.c.l.b16 %v171
    %v451 = vunpack.c.l.b16 %v172
    %v452 = vunpack.c.h.b16 %v172
    %v453 = vunpack.c.l.b16 %v173
    %v454 = vunpack.c.l.b16 %v174
    %v455 = vunpack.c.h.b16 %v174
    %v456 = vunpack.c.l.b16 %v175
    %v457 = vunpack.c.l.b16 %v176
    %v458 = vunpack.c.h.b16 %v176
    %v459 = vunpack.c.l.b16 %v177
    %v460 = vunpack.c.l.b16 %v178
    %v461 = vunpack.c.h.b16 %v178
    %v462 = vunpack.c.l.b16 %v179
    %v463 = vunpack.c.l.b16 %v180
    %v464 = vunpack.c.h.b16 %v180
    %v465 = vunpack.c.l.b16 %v181
    %v466 = vunpack.c.l.b16 %v182
    %v467 = vunpack.c.h.b16 %v182
    %v468 = vunpack.c.l.b16 %v183
    %v469 = vunpack.c.l.b16 %v184
    %v470 = vunpack.c.h.b16 %v184
    %v471 = vunpack.c.l.b16 %v185
    %v472 = vunpack.c.l.b16 %v186
    %v473 = vunpack.c.h.b16 %v186
    %v474 = vunpack.c.l.b16 %v187
    %v475 = vunpack.c.l.b16 %v188
    %v476 = vunpack.c.h.b16 %v188
    %v477 = vunpack.c.l.b16 %v189
    %v478 = vunpack.c.l.b16 %v190
    %v479 = vunpack.c.h.b16 %v190
    %v480 = vunpack.c.l.b16 %v191
    %v481 = vunpack.c.l.b16 %v192
    %v482 = vunpack.c.h.b16 %v192
    %v483 = vunpack.c.l.b16 %v193
    %v484 = vunpack.c.l.b16 %v194
    %v485 = vunpack.c.h.b16 %v194
    %v486 = vunpack.c.l.b16 %v195
    %v487 = vunpack.c.l.b16 %v196
    %v488 = vunpack.c.h.b16 %v196
    %v489 = vunpack.c.l.b16 %v197
    %v490 = vunpack.c.l.b16 %v198
    %v491 = vunpack.c.h.b16 %v198
    %v492 = vunpack.c.l.b16 %v199
    %v493 = vunpack.c.l.b16 %v200
    %v494 = vunpack.c.h.b16 %v200
    %v495 = vunpack.c.l.b16 %v201
    %v496 = vunpack.c.l.b16 %v202
    %v497 = vunpack.c.h.b16 %v202
    %v498 = vunpack.c.l.b16 %v203
    %v499 = vunpack.c.l.b16 %v204
    %v500 = vunpack.c.h.b16 %v204
    %v501 = vunpack.c.l.b16 %v205
    %v502 = vunpack.c.l.b16 %v206
    %v503 = vunpack.c.h.b16 %v206
    %v504 = vunpack.c.l.b16 %v207
    %v505 = vunpack.c.l.b16 %v208
    %v506 = vunpack.c.h.b16 %v208
    %v507 = vunpack.c.l.b16 %v209
    %v508 = vunpack.c.l.b16 %v210
    %v509 = vunpack.c.h.b16 %v210
    %v510 = vunpack.c.l.b16 %v211
    %v511 = vunpack.c.l.b16 %v212
    %v512 = vunpack.c.h.b16 %v212
    %v513 = vunpack.c.l.b16 %v213
    %v514 = vunpack.c.l.b16 %v214
    %v515 = vunpack.c.h.b16 %v214
    %v516 = vunpack.c.l.b16 %v215
    %v517 = vunpack.c.l.b16 %v216
    %v518 = vunpack.c.h.b16 %v216
    %v519 = vunpack.c.l.b16 %v217
    %v520 = vunpack.c.l.b16 %v218
    %v521 = vunpack.c.h.b16 %v218
    %v522 = vunpack.c.l.b16 %v219
    %v523 = vunpack.c.l.b16 %v220
    %v524 = vunpack.c.h.b16 %v220
    %v525 = vunpack.c.l.b16 %v221
    %v526 = vunpack.c.l.b16 %v222
    %v527 = vunpack.c.h.b16 %v222
    %v528 = vunpack.c.l.b16 %v223
    %v529 = vunpack.c.l.b16 %v224
    %v530 = vunpack.c.h.b16 %v224
    %v531 = vunpack.c.l.b16 %v225
    %v532 = vunpack.c.l.b16 %v226
    %v533 = vunpack.c.h.b16 %v226
    %v534 = vunpack.c.l.b16 %v227
    %v535 = vunpack.c.l.b16 %v228
    %v536 = vunpack.c.h.b16 %v228
    %v537 = vunpack.c.l.b16 %v229
    %v538 = vunpack.c.l.b16 %v230
    %v539 = vunpack.c.h.b16 %v230
    %v540 = vunpack.c.l.b16 %v231
    %v541 = vunpack.c.l.b16 %v232
    %v542 = vunpack.c.h.b16 %v232
    %v543 = vunpack.c.l.b16 %v233
    %v544 = vunpack.c.l.b16 %v234
    %v545 = vunpack.c.h.b16 %v234
    %v546 = vunpack.c.l.b16 %v235
    %v547 = vunpack.c.l.b16 %v236
    %v548 = vunpack.c.h.b16 %v236
    %v549 = vunpack.c.l.b16 %v237
    %v550 = vunpack.c.l.b16 %v238
    %v551 = vunpack.c.h.b16 %v238
    %v552 = vunpack.c.l.b16 %v239
    %v553 = vunpack.c.l.b16 %v240
    %v554 = vunpack.c.h.b16 %v240
    %v555 = vunpack.c.l.b16 %v241
    %v556 = vunpack.c.l.b16 %v242
    %v557 = vunpack.c.h.b16 %v242
    %v558 = vunpack.c.l.b16 %v243
    %v559 = vunpack.c.l.b16 %v244
    %v560 = vunpack.c.h.b16 %v244
    %v561 = vunpack.c.l.b16 %v245
    %v562 = vunpack.c.l.b16 %v246
    %v563 = vunpack.c.h.b16 %v246
    %v564 = vunpack.c.l.b16 %v247
    %v565 = vunpack.c.l.b16 %v248
    %v566 = vunpack.c.h.b16 %v248
    %v567 = vunpack.c.l.b16 %v249
    %v568 = vunpack.c.l.b16 %v250
    %v569 = vunpack.c.h.b16 %v250
    %v570 = vunpack.c.l.b16 %v251
    %v571 = vunpack.c.l.b16 %v252
    %v572 = vunpack.c.h.b16 %v252
    %v573 = vunpack.c.l.b16 %v253
    %v574 = vunpack.c.l.b16 %v254
    %v575 = vunpack.c.h.b16 %v254
    %v576 = vunpack.c.l.b16 %v255
    %v577 = vunpack.c.l.b16 %v256
    %v578 = vunpack.c.h.b16 %v256
    %v579 = vunpack.c.l.b16 %v257
    %v580 = vunpack.c.l.b16 %v258
    %v581 = vunpack.c.h.b16 %v258
    %v582 = vunpack.c.l.b16 %v259
    %v583 = vunpack.c.l.b16 %v260
    %v584 = vunpack.c.h.b16 %v260
    %v585 = vunpack.c.l.b16 %v261
    %v586 = vunpack.c.l.b16 %v262
    %v587 = vunpack.c.h.b16 %v262
    %v588 = vunpack.c.l.b16 %v263
    %v589 = vunpack.c.l.b16 %v264
    %v590 = vunpack.c.h.b16 %v264
    %v591 = vunpack.c.l.b16 %v265
    %v592 = vunpack.c.l.b16 %v266
    %v593 = vunpack.c.h.b16 %v266
    %v594 = vunpack.c.l.b16 %v267
    %v595 = vunpack.c.l.b16 %v268
    %v596 = vunpack.c.h.b16 %v268
    %v597 = vunpack.c.l.b16 %v269
    %v598 = vunpack.c.l.b16 %v270
    %v599 = vunpack.c.h.b16 %v270
    %v600 = vunpack.c.l.b16 %v271
    %v601 = vunpack.c.l.b16 %v272
    %v602 = vunpack.c.h.b16 %v272
    %v603 = vunpack.c.l.b16 %v273
    %v604 = vunpack.c.l.b16 %v274
    %v605 = vunpack.c.h.b16 %v274
    %v606 = vunpack.c.l.b16 %v275
    %v607 = vunpack.c.l.b16 %v276
    %v608 = vunpack.c.h.b16 %v276
    %v609 = vunpack.c.l.b16 %v277
    %v610 = vunpack.c.l.b16 %v278
    %v611 = vunpack.c.h.b16 %v278
    %v612 = vunpack.c.l.b16 %v279
    %v613 = vunpack.c.l.b16 %v280
    %v614 = vunpack.c.h.b16 %v280
    %v615 = vunpack.c.l.b16 %v281
    %v616 = vunpack.c.l.b16 %v282
    %v617 = vunpack.c.h.b16 %v282
    %v618 = vunpack.c.l.b16 %v283
    %v619 = vpack.c.b16 %v430, %v427
    %v620 = vpack.c.b16 %v431, %v428
    %v621 = vpack.c.b16 %v432, %v429
    %v622 = vpack.c.b16 %v436, %v433
    %v623 = vpack.c.b16 %v437, %v434
    %v624 = vpack.c.b16 %v438, %v435
    %v625 = vpack.c.b16 %v442, %v439
    %v626 = vpack.c.b16 %v443, %v440
    %v627 = vpack.c.b16 %v444, %v441
    %v628 = vpack.c.b16 %v448, %v445
    %v629 = vpack.c.b16 %v449, %v446
    %v630 = vpack.c.b16 %v450, %v447
    %v631 = vpack.c.b16 %v454, %v451
    %v632 = vpack.c.b16 %v455, %v452
    %v633 = vpack.c.b16 %v456, %v453
    %v634 = vpack.c.b16 %v460, %v457
    %v635 = vpack.c.b16 %v461, %v458
    %v636 = vpack.c.b16 %v462, %v459
    %v637 = vpack.c.b16 %v466, %v463
    %v638 = vpack.c.b16 %v467, %v464
    %v639 = vpack.c.b16 %v468, %v465
    %v640 = vpack.c.b16 %v472, %v469
    %v641 = vpack.c.b16 %v473, %v470
    %v642 = vpack.c.b16 %v474, %v471
    %v643 = vpack.c.b16 %v478, %v475
    %v644 = vpack.c.b16 %v479, %v476
    %v645 = vpack.c.b16 %v480, %v477
    %v646 = vpack.c.b16 %v484, %v481
    %v647 = vpack.c.b16 %v485, %v482
    %v648 = vpack.c.b16 %v486, %v483
    %v649 = vpack.c.b16 %v490, %v487
    %v650 = vpack.c.b16 %v491, %v488
    %v651 = vpack.c.b16 %v492, %v489
    %v652 = vpack.c.b16 %v496, %v493
    %v653 = vpack.c.b16 %v497, %v494
    %v654 = vpack.c.b16 %v498, %v495
    %v655 = vpack.c.b16 %v502, %v499
    %v656 = vpack.c.b16 %v503, %v500
    %v657 = vpack.c.b16 %v504, %v501
    %v658 = vpack.c.b16 %v508, %v505
    %v659 = vpack.c.b16 %v509, %v506
    %v660 = vpack.c.b16 %v510, %v507
    %v661 = vpack.c.b16 %v514, %v511
    %v662 = vpack.c.b16 %v515, %v512
    %v663 = vpack.c.b16 %v516, %v513
    %v664 = vpack.c.b16 %v520, %v517
    %v665 = vpack.c.b16 %v521, %v518
    %v666 = vpack.c.b16 %v522, %v519
    %v667 = vpack.c.b16 %v526, %v523
    %v668 = vpack.c.b16 %v527, %v524
    %v669 = vpack.c.b16 %v528, %v525
    %v670 = vpack.c.b16 %v532, %v529
    %v671 = vpack.c.b16 %v533, %v530
    %v672 = vpack.c.b16 %v534, %v531
    %v673 = vpack.c.b16 %v538, %v535
    %v674 = vpack.c.b16 %v539, %v536
    %v675 = vpack.c.b16 %v540, %v537
    %v676 = vpack.c.b16 %v544, %v541
    %v677 = vpack.c.b16 %v545, %v542
    %v678 = vpack.c.b16 %v546, %v543
    %v679 = vpack.c.b16 %v550, %v547
    %v680 = vpack.c.b16 %v551, %v548
    %v681 = vpack.c.b16 %v552, %v549
    %v682 = vpack.c.b16 %v556, %v553
    %v683 = vpack.c.b16 %v557, %v554
    %v684 = vpack.c.b16 %v558, %v555
    %v685 = vpack.c.b16 %v562, %v559
    %v686 = vpack.c.b16 %v563, %v560
    %v687 = vpack.c.b16 %v564, %v561
    %v688 = vpack.c.b16 %v568, %v565
    %v689 = vpack.c.b16 %v569, %v566
    %v690 = vpack.c.b16 %v570, %v567
    %v691 = vpack.c.b16 %v574, %v571
    %v692 = vpack.c.b16 %v575, %v572
    %v693 = vpack.c.b16 %v576, %v573
    %v694 = vpack.c.b16 %v580, %v577
    %v695 = vpack.c.b16 %v581, %v578
    %v696 = vpack.c.b16 %v582, %v579
    %v697 = vpack.c.b16 %v586, %v583
    %v698 = vpack.c.b16 %v587, %v584
    %v699 = vpack.c.b16 %v588, %v585
    %v700 = vpack.c.b16 %v592, %v589
    %v701 = vpack.c.b16 %v593, %v590
    %v702 = vpack.c.b16 %v594, %v591
    %v703 = vpack.c.b16 %v598, %v595
    %v704 = vpack.c.b16 %v599, %v596
    %v705 = vpack.c.b16 %v600, %v597
    %v706 = vpack.c.b16 %v604, %v601
    %v707 = vpack.c.b16 %v605, %v602
    %v708 = vpack.c.b16 %v606, %v603
    %v709 = vpack.c.b16 %v610, %v607
    %v710 = vpack.c.b16 %v611, %v608
    %v711 = vpack.c.b16 %v612, %v609
    %v712 = vpack.c.b16 %v616, %v613
    %v713 = vpack.c.b16 %v617, %v614
    %v714 = vpack.c.b16 %v618, %v615
    %811 = vmatpush.bf16.msra.mxu0 %v640
    %812 = vmatpush.bf16.msra.mxu0 %v637
    %813 = vmatpush.bf16.msra.mxu0 %v634
    %814 = vmatpush.bf16.msra.mxu0 %v631
    %815 = vmatpush.bf16.msra.mxu0 %v628
    %816 = vmatpush.bf16.msra.mxu0 %v625
    %817 = vmatpush.bf16.msra.mxu0 %v622
    %818 = vmatpush.bf16.msra.mxu0 %v619
    %819 = vmatmul.bf16.gmra.mxu0 %v152
    %v820 = vpop.f32.mrf.mxu0
    %v821 = vadd.f32 %v296, %v820
    %v822 = vpop.f32.mrf.mxu0
    %823 = vdwg.mxu0
    %824 = vmatpush.bf16.msra.mxu0 %v664
    %825 = vmatpush.bf16.msra.mxu0 %v661
    %826 = vmatpush.bf16.msra.mxu0 %v658
    %827 = vmatpush.bf16.msra.mxu0 %v655
    %828 = vmatpush.bf16.msra.mxu0 %v652
    %829 = vmatpush.bf16.msra.mxu0 %v649
    %830 = vmatpush.bf16.msra.mxu0 %v646
    %831 = vmatpush.bf16.msra.mxu0 %v643
    %832 = vmatmul.bf16.gmra.mxu0 %v153
    %v833 = vpop.f32.mrf.mxu0
    %v834 = vadd.f32 %v821, %v833
    %v835 = vpop.f32.mrf.mxu0
    %836 = vdwg.mxu0
    %837 = vmatpush.bf16.msra.mxu0 %v688
    %838 = vmatpush.bf16.msra.mxu0 %v685
    %839 = vmatpush.bf16.msra.mxu0 %v682
    %840 = vmatpush.bf16.msra.mxu0 %v679
    %841 = vmatpush.bf16.msra.mxu0 %v676
    %842 = vmatpush.bf16.msra.mxu0 %v673
    %843 = vmatpush.bf16.msra.mxu0 %v670
    %844 = vmatpush.bf16.msra.mxu0 %v667
    %845 = vmatmul.bf16.gmra.mxu0 %v154
    %v846 = vpop.f32.mrf.mxu0
    %v847 = vadd.f32 %v834, %v846
    %v848 = vpop.f32.mrf.mxu0
    %849 = vdwg.mxu0
    %850 = vmatpush.bf16.msra.mxu0 %v712
    %851 = vmatpush.bf16.msra.mxu0 %v709
    %852 = vmatpush.bf16.msra.mxu0 %v706
    %853 = vmatpush.bf16.msra.mxu0 %v703
    %854 = vmatpush.bf16.msra.mxu0 %v700
    %855 = vmatpush.bf16.msra.mxu0 %v697
    %856 = vmatpush.bf16.msra.mxu0 %v694
    %857 = vmatpush.bf16.msra.mxu0 %v691
    %858 = vmatmul.bf16.gmra.mxu0 %v155
    %v859 = vpop.f32.mrf.mxu0
    %v860 = vadd.f32 %v847, %v859
    %v861 = vpop.f32.mrf.mxu0
    %862 = vdwg.mxu0
    %863 = vmatpush.bf16.msra.mxu0 %v641
    %864 = vmatpush.bf16.msra.mxu0 %v638
    %865 = vmatpush.bf16.msra.mxu0 %v635
    %866 = vmatpush.bf16.msra.mxu0 %v632
    %867 = vmatpush.bf16.msra.mxu0 %v629
    %868 = vmatpush.bf16.msra.mxu0 %v626
    %869 = vmatpush.bf16.msra.mxu0 %v623
    %870 = vmatpush.bf16.msra.mxu0 %v620
    %871 = vmatmul.bf16.gmra.mxu0 %v152
    %v872 = vpop.f32.mrf.mxu0
    %v873 = vadd.f32 %v297, %v872
    %v874 = vpop.f32.mrf.mxu0
    %875 = vdwg.mxu0
    %876 = vmatpush.bf16.msra.mxu0 %v665
    %877 = vmatpush.bf16.msra.mxu0 %v662
    %878 = vmatpush.bf16.msra.mxu0 %v659
    %879 = vmatpush.bf16.msra.mxu0 %v656
    %880 = vmatpush.bf16.msra.mxu0 %v653
    %881 = vmatpush.bf16.msra.mxu0 %v650
    %882 = vmatpush.bf16.msra.mxu0 %v647
    %883 = vmatpush.bf16.msra.mxu0 %v644
    %884 = vmatmul.bf16.gmra.mxu0 %v153
    %v885 = vpop.f32.mrf.mxu0
    %v886 = vadd.f32 %v873, %v885
    %v887 = vpop.f32.mrf.mxu0
    %888 = vdwg.mxu0
    %889 = vmatpush.bf16.msra.mxu0 %v689
    %890 = vmatpush.bf16.msra.mxu0 %v686
    %891 = vmatpush.bf16.msra.mxu0 %v683
    %892 = vmatpush.bf16.msra.mxu0 %v680
    %893 = vmatpush.bf16.msra.mxu0 %v677
    %894 = vmatpush.bf16.msra.mxu0 %v674
    %895 = vmatpush.bf16.msra.mxu0 %v671
    %896 = vmatpush.bf16.msra.mxu0 %v668
    %897 = vmatmul.bf16.gmra.mxu0 %v154
    %v898 = vpop.f32.mrf.mxu0
    %v899 = vadd.f32 %v886, %v898
    %v900 = vpop.f32.mrf.mxu0
    %901 = vdwg.mxu0
    %902 = vmatpush.bf16.msra.mxu0 %v713
    %903 = vmatpush.bf16.msra.mxu0 %v710
    %904 = vmatpush.bf16.msra.mxu0 %v707
    %905 = vmatpush.bf16.msra.mxu0 %v704
    %906 = vmatpush.bf16.msra.mxu0 %v701
    %907 = vmatpush.bf16.msra.mxu0 %v698
    %908 = vmatpush.bf16.msra.mxu0 %v695
    %909 = vmatpush.bf16.msra.mxu0 %v692
    %910 = vmatmul.bf16.gmra.mxu0 %v155
    %v911 = vpop.f32.mrf.mxu0
    %v912 = vadd.f32 %v899, %v911
    %v913 = vpop.f32.mrf.mxu0
    %914 = vdwg.mxu0
    %915 = vmatpush.bf16.msra.mxu0 %v642
    %916 = vmatpush.bf16.msra.mxu0 %v639
    %917 = vmatpush.bf16.msra.mxu0 %v636
    %918 = vmatpush.bf16.msra.mxu0 %v633
    %919 = vmatpush.bf16.msra.mxu0 %v630
    %920 = vmatpush.bf16.msra.mxu0 %v627
    %921 = vmatpush.bf16.msra.mxu0 %v624
    %922 = vmatpush.bf16.msra.mxu0 %v621
    %923 = vmatmul.bf16.gmra.mxu0 %v152
    %v924 = vpop.f32.mrf.mxu0
    %v925 = vadd.f32 %v298, %v924
    %v926 = vpop.f32.mrf.mxu0
    %927 = vdwg.mxu0
    %928 = vmatpush.bf16.msra.mxu0 %v666
    %929 = vmatpush.bf16.msra.mxu0 %v663
    %930 = vmatpush.bf16.msra.mxu0 %v660
    %931 = vmatpush.bf16.msra.mxu0 %v657
    %932 = vmatpush.bf16.msra.mxu0 %v654
    %933 = vmatpush.bf16.msra.mxu0 %v651
    %934 = vmatpush.bf16.msra.mxu0 %v648
    %935 = vmatpush.bf16.msra.mxu0 %v645
    %936 = vmatmul.bf16.gmra.mxu0 %v153
    %v937 = vpop.f32.mrf.mxu0
    %v938 = vadd.f32 %v925, %v937
    %v939 = vpop.f32.mrf.mxu0
    %940 = vdwg.mxu0
    %941 = vmatpush.bf16.msra.mxu0 %v690
    %942 = vmatpush.bf16.msra.mxu0 %v687
    %943 = vmatpush.bf16.msra.mxu0 %v684
    %944 = vmatpush.bf16.msra.mxu0 %v681
    %945 = vmatpush.bf16.msra.mxu0 %v678
    %946 = vmatpush.bf16.msra.mxu0 %v675
    %947 = vmatpush.bf16.msra.mxu0 %v672
    %948 = vmatpush.bf16.msra.mxu0 %v669
    %949 = vmatmul.bf16.gmra.mxu0 %v154
    %v950 = vpop.f32.mrf.mxu0
    %v951 = vadd.f32 %v938, %v950
    %v952 = vpop.f32.mrf.mxu0
    %953 = vdwg.mxu0
    %954 = vmatpush.bf16.msra.mxu0 %v714
    %955 = vmatpush.bf16.msra.mxu0 %v711
    %956 = vmatpush.bf16.msra.mxu0 %v708
    %957 = vmatpush.bf16.msra.mxu0 %v705
    %958 = vmatpush.bf16.msra.mxu0 %v702
    %959 = vmatpush.bf16.msra.mxu0 %v699
    %960 = vmatpush.bf16.msra.mxu0 %v696
    %961 = vmatpush.bf16.msra.mxu0 %v693
    %962 = vmatmul.bf16.gmra.mxu0 %v155
    %v963 = vpop.f32.mrf.mxu0
    %v964 = vadd.f32 %v951, %v963
    %v965 = vpop.f32.mrf.mxu0
    %966 = vdwg.mxu0
    %v967 = vld [vmem:[%s5] sm:$0x7]
    %v969 = vperm.slane %v967, 0
    %v970 = vperm.slane %v967, 1
    %v971 = vperm.slane %v967, 2
    %v975 = vadd.f32 %v860, %v969
    %v976 = vadd.f32 %v912, %v970
    %v977 = vadd.f32 %v964, %v971
    %v978 = vmax.f32 %v975, 0.0
    %v979 = vmax.f32 %v976, 0.0
    %v980 = vmax.f32 %v977, 0.0
    %v981 = vld [vmem:[%s6] sm:$0x7]
    %v983 = vperm.slane %v981, 0
    %v984 = vperm.slane %v981, 1
    %v985 = vperm.slane %v981, 2
    %v989 = vmul.f32 %v978, %v983
    %v990 = vmul.f32 %v979, %v984
    %v991 = vmul.f32 %v980, %v985
    %v992 = vadd.f32 %v989, %v990
    %v993 = vadd.f32 %v992, %v991
    %994 = vadd.xlane.f32.xlu0 %v993
    %v995 = vpop.xlane.xlu0 %994
    %s996 = sld [smem:[#allocation2]]
    %v997 = vstv %s996
    %v998 = vadd.f32 %v995, %v997
    %vm999 = vcmask 7168
    %1000 = vst.msk [vmem:[%s8] sm:$0xff] %vm999, %v998
    // Predicated region
    $region42: #{tpu_custom_call.1} parent=1 // pred_check
      _
    $region43: #{tpu_custom_call.1} parent=1 // pred_check_branch
      %1002 = sbr.rel (0) target = $region45
    $region44: #{tpu_custom_call.1} parent=1 // pred_region
      _
    $region45: #{tpu_custom_call.1} parent=1 // pred_fallthru
      _
    // Predicated region
    $region46: #{tpu_custom_call.1} parent=1 // pred_check
      _
    $region47: #{tpu_custom_call.1} parent=1 // pred_check_branch
      %1004 = sbr.rel (0) target = $region49
    $region48: #{tpu_custom_call.1} parent=1 // pred_region
      _
    $region49: #{tpu_custom_call.1} parent=1 // pred_fallthru
      _
    %1005 = vsyncpa [#allocation4], 1
    %1006 = vsyncpa [#allocation6], 1

</llo_original>
